<compile_context>
chip_gen: v7x
topology: tpu7x:2x2x1
jax: 0.10.0
libtpu: 0.0.40
codegen_flags: <defaults>
</compile_context>

<pallas_src>
import math
from functools import lru_cache

import jax
import jax.numpy as jnp
from jax import lax
from jax.experimental import pallas as pl
from jax.experimental.pallas import tpu as pltpu


# ----------------------------------------------------------------------------
# helpers for tile selection / padding
# ----------------------------------------------------------------------------
def _round_up(x, m):
    return ((x + m - 1) // m) * m


def _pick_tm(M):
    # bf16 operands -> sublane tile must be a multiple of 16 (or full dim)
    return min(256, _round_up(max(M, 1), 16))


def _pick_div(dim, candidates):
    for t in candidates:
        if dim % t == 0:
            return t
    return 128


# ----------------------------------------------------------------------------
# Batched (tower-paired) Pallas tiled GEMM kernel:
#   out[t] = act?( A[t] @ B[t] + bias[t] (+ add[t]) )
# A: (T, Mp, Kp) bf16   B: (T, Kp, Np) bf16   bias: (T, 1, Np) f32
# add (optional, residual identity): (T, Mp, Np) bf16
# Accumulation in f32 VMEM scratch, output bf16.
# ----------------------------------------------------------------------------
@lru_cache(maxsize=None)
def _gemm_call(T, Mp, Kp, Np, TM, TK, TN, relu, has_add, out_dtype_name):
    out_dtype = jnp.dtype(out_dtype_name)
    nk = Kp // TK

    def kernel(*refs):
        if has_add:
            a_ref, b_ref, bias_ref, add_ref, o_ref, acc_ref = refs
        else:
            a_ref, b_ref, bias_ref, o_ref, acc_ref = refs
            add_ref = None

        k = pl.program_id(3)

        @pl.when(k == 0)
        def _init():
            acc_ref[...] = jnp.zeros_like(acc_ref)

        acc_ref[...] += jnp.dot(a_ref[0], b_ref[0],
                                preferred_element_type=jnp.float32)

        @pl.when(k == nk - 1)
        def _fin():
            r = acc_ref[...] + bias_ref[0]
            if has_add:
                r = r + add_ref[0].astype(jnp.float32)
            if relu:
                r = jnp.maximum(r, 0.0)
            o_ref[0] = r.astype(out_dtype)

    in_specs = [
        pl.BlockSpec((1, TM, TK), lambda t, i, j, k: (t, i, k)),
        pl.BlockSpec((1, TK, TN), lambda t, i, j, k: (t, k, j)),
        pl.BlockSpec((1, 1, TN), lambda t, i, j, k: (t, 0, j)),
    ]
    if has_add:
        in_specs.append(pl.BlockSpec((1, TM, TN), lambda t, i, j, k: (t, i, j)))

    grid = (T, Mp // TM, Np // TN, nk)
    return pl.pallas_call(
        kernel,
        out_shape=jax.ShapeDtypeStruct((T, Mp, Np), out_dtype),
        grid_spec=pltpu.PrefetchScalarGridSpec(
            num_scalar_prefetch=0,
            grid=grid,
            in_specs=in_specs,
            out_specs=pl.BlockSpec((1, TM, TN), lambda t, i, j, k: (t, i, j)),
            scratch_shapes=[pltpu.VMEM((TM, TN), jnp.float32)],
        ),
        compiler_params=pltpu.CompilerParams(
            dimension_semantics=("parallel", "parallel", "parallel", "arbitrary"),
            vmem_limit_bytes=32 * 1024 * 1024,
        ),
    )


# ----------------------------------------------------------------------------
# Projection head kernels (small, whole-array in VMEM)
# ----------------------------------------------------------------------------
@lru_cache(maxsize=None)
def _first_linear_call(B, H, P):
    # skinny GEMM (M = batch): single shot, no M padding / tiled grid needed
    def kernel(x_ref, w_ref, b_ref, o_ref):
        y = jnp.dot(x_ref[...], w_ref[...],
                    preferred_element_type=jnp.float32) + b_ref[...]
        o_ref[...] = y.astype(o_ref.dtype)

    return pl.pallas_call(
        kernel, out_shape=jax.ShapeDtypeStruct((B, P), jnp.float32))


@lru_cache(maxsize=None)
def _proj_layer_call(B, P):
    # h = GELU(x); y = h @ W + b; (dropout: eval identity); z = y + x; LN(z)
    def kernel(x_ref, w_ref, b_ref, g_ref, bt_ref, o_ref):
        x = x_ref[...]
        h = jax.nn.gelu(x, approximate=False)          # nn.GELU() (erf-exact)
        y = jnp.dot(h, w_ref[...],
                    preferred_element_type=jnp.float32) + b_ref[...]
        # TODO(synk): training-mode Dropout (rate>0) not implemented; eval semantics (identity).
        z = y + x
        mu = jnp.mean(z, axis=-1, keepdims=True)
        var = jnp.mean(jnp.square(z - mu), axis=-1, keepdims=True)
        zn = (z - mu) * jax.lax.rsqrt(var + 1e-5)      # LayerNorm eps = 1e-5
        o_ref[...] = (zn * g_ref[...] + bt_ref[...]).astype(o_ref.dtype)

    return pl.pallas_call(
        kernel, out_shape=jax.ShapeDtypeStruct((B, P), jnp.float32))


# ----------------------------------------------------------------------------
# Conv (im2col for kh>1 only) + folded BatchNorm, both towers at once
# ----------------------------------------------------------------------------
def _im2col_pair(x, kh, kw, stride, pad):
    # x: (T, B, H, W, C) bf16 -> patches (T, B*oh*ow, kh*kw*C) bf16
    # TODO(synk): 3x3 / 7x7 patches are still materialized in HBM (JAX glue);
    #             a tap-axis fused BlockSpec would remove this round-trip.
    T, B, H, W, C = x.shape
    xm = x.reshape(T * B, H, W, C)
    if pad > 0:
        xm = jnp.pad(xm, ((0, 0), (pad, pad), (pad, pad), (0, 0)))
    Hp, Wp = xm.shape[1], xm.shape[2]
    oh = (Hp - kh) // stride + 1
    ow = (Wp - kw) // stride + 1
    cols = []
    for i in range(kh):
        for j in range(kw):
            cols.append(xm[:, i:i + (oh - 1) * stride + 1:stride,
                           j:j + (ow - 1) * stride + 1:stride, :])
    patches = jnp.stack(cols, axis=3)                  # (T*B, oh, ow, kh*kw, C)
    return patches.reshape(T, B * oh * ow, kh * kw * C), oh, ow


def init_conv_bn_pair(keys, kh, kw, cin, cout):
    """Fold conv + BN for each tower; pad to 128-multiples once; store bf16."""
    K = kh * kw * cin
    Kp = _round_up(K, 128)
    Np = _round_up(cout, 128)
    ws, bs = [], []
    for key in keys:
        k1, k2, k3, k4, k5 = jax.random.split(key, 5)
        w = jax.random.normal(k1, (kh, kw, cin, cout), jnp.float32) * math.sqrt(
            2.0 / (kh * kw * cin))
        gamma = jax.random.uniform(k2, (cout,), minval=0.9, maxval=1.1)
        beta = 0.01 * jax.random.normal(k3, (cout,))
        mean = 0.01 * jax.random.normal(k4, (cout,))
        var = jax.random.uniform(k5, (cout,), minval=0.9, maxval=1.1)
        scale = gamma / jnp.sqrt(var + 1e-5)           # BN eps = 1e-5
        w_f = (w * scale).reshape(K, cout)             # fold BN into conv
        b_f = beta - mean * scale
        ws.append(jnp.pad(w_f, ((0, Kp - K), (0, Np - cout))))
        bs.append(jnp.pad(b_f.reshape(1, -1), ((0, 0), (0, Np - cout))))
    return {
        "w": jnp.stack(ws).astype(jnp.bfloat16),       # (2, Kp, Np) bf16
        "b": jnp.stack(bs).astype(jnp.float32),        # (2, 1, Np)  f32
        "kh": kh, "kw": kw, "cin": cin, "cout": cout, "Kp": Kp, "Np": Np,
    }


def conv_bn_pair(x, p, stride, pad, relu, add=None):
    """x: (2, B, H, W, Cin) bf16 -> (2, B, OH, OW, Cout) bf16.
    If `add` is given, computes relu(conv_bn(x) + add) fused in the GEMM epilogue."""
    T = x.shape[0]
    kh, kw = p["kh"], p["kw"]
    if kh == 1 and kw == 1:
        if stride > 1:
            x = x[:, :, ::stride, ::stride, :]
        _, B, oh, ow, C = x.shape
        a = x.reshape(T, B * oh * ow, C)               # no im2col for 1x1
    else:
        B = x.shape[1]
        a, oh, ow = _im2col_pair(x, kh, kw, stride, pad)

    M, K = a.shape[1], a.shape[2]
    Kp, Np, cout = p["Kp"], p["Np"], p["cout"]
    TM = _pick_tm(M)
    Mp = _round_up(M, TM)
    TK = _pick_div(Kp, (1024, 768, 512, 384, 256, 128))
    TN = _pick_div(Np, (512, 384, 256, 128))

    a_p = jnp.pad(a, ((0, 0), (0, Mp - M), (0, Kp - K))).astype(jnp.bfloat16)
    inputs = [a_p, p["w"], p["b"]]
    if add is not None:
        add2 = add.reshape(T, M, cout)
        add_p = jnp.pad(add2, ((0, 0), (0, Mp - M),
                               (0, Np - cout))).astype(jnp.bfloat16)
        inputs.append(add_p)

    out = _gemm_call(T, Mp, Kp, Np, TM, TK, TN,
                     bool(relu), add is not None, "bfloat16")(*inputs)
    return out[:, :M, :cout].reshape(T, B, oh, ow, cout)


# ----------------------------------------------------------------------------
# ResNet50 (feature extractor, final fc removed -> global-avg-pool features)
# Both towers (resnet_image1 / resnet_image2) run in lockstep.
# ----------------------------------------------------------------------------
def make_bottleneck_pair(k1, k2, cin, width, stride):
    ks1 = jax.random.split(k1, 4)
    ks2 = jax.random.split(k2, 4)
    need_down = (stride != 1) or (cin != width * 4)
    return {
        "c1": init_conv_bn_pair((ks1[0], ks2[0]), 1, 1, cin, width),
        "c2": init_conv_bn_pair((ks1[1], ks2[1]), 3, 3, width, width),
        "c3": init_conv_bn_pair((ks1[2], ks2[2]), 1, 1, width, width * 4),
        "down": (init_conv_bn_pair((ks1[3], ks2[3]), 1, 1, cin, width * 4)
                 if need_down else None),
        "stride": stride,
    }


def bottleneck_pair_fwd(x, p):
    if p["down"] is not None:
        identity = conv_bn_pair(x, p["down"], stride=p["stride"], pad=0, relu=False)
    else:
        identity = x
    out = conv_bn_pair(x, p["c1"], stride=1, pad=0, relu=True)
    out = conv_bn_pair(out, p["c2"], stride=p["stride"], pad=1, relu=True)
    # residual add + final ReLU fused into the c3 GEMM epilogue
    out = conv_bn_pair(out, p["c3"], stride=1, pad=0, relu=True, add=identity)
    return out


def make_resnet50_pair(key1, key2):
    keys1 = jax.random.split(key1, 5)
    keys2 = jax.random.split(key2, 5)
    params = {"stem": init_conv_bn_pair((keys1[0], keys2[0]), 7, 7, 3, 64)}
    cfg = [(64, 3, 1), (128, 4, 2), (256, 6, 2), (512, 3, 2)]
    cin = 64
    layers = []
    for li, (width, nblocks, stride) in enumerate(cfg):
        bk1 = jax.random.split(keys1[li + 1], nblocks)
        bk2 = jax.random.split(keys2[li + 1], nblocks)
        blocks = []
        for bi in range(nblocks):
            s = stride if bi == 0 else 1
            blocks.append(make_bottleneck_pair(bk1[bi], bk2[bi], cin, width, s))
            cin = width * 4
        layers.append(blocks)
    params["layers"] = layers
    return params


def resnet50_pair_fwd(x_pair, params):
    # x_pair: (2, B, H, W, 3) bf16
    x = conv_bn_pair(x_pair, params["stem"], stride=2, pad=3, relu=True)
    # MaxPool2d(kernel=3, stride=2, padding=1) -- pooling glue via reduce_window
    x = lax.reduce_window(x.astype(jnp.float32), -jnp.inf, lax.max,
                          (1, 1, 3, 3, 1), (1, 1, 2, 2, 1),
                          [(0, 0), (0, 0), (1, 1), (1, 1), (0, 0)]
                          ).astype(jnp.bfloat16)
    for blocks in params["layers"]:
        for p in blocks:
            x = bottleneck_pair_fwd(x, p)
    # AdaptiveAvgPool2d((1,1)) -> (2, B, 2048) in f32
    return jnp.mean(x.astype(jnp.float32), axis=(2, 3))


# ----------------------------------------------------------------------------
# Projection head (Project_Embeddings)
# ----------------------------------------------------------------------------
def make_projection(key, num_layers, hidden_dim, projection_dim):
    keys = jax.random.split(key, num_layers + 1)
    bound1 = 1.0 / math.sqrt(hidden_dim)
    kw1, kb1 = jax.random.split(keys[0])
    first_w = jax.random.uniform(kw1, (hidden_dim, projection_dim),
                                 minval=-bound1, maxval=bound1)
    first_b = jax.random.uniform(kb1, (1, projection_dim),
                                 minval=-bound1, maxval=bound1)
    layers = []
    bound = 1.0 / math.sqrt(projection_dim)
    for i in range(num_layers):
        kw, kb = jax.random.split(keys[i + 1])
        w = jax.random.uniform(kw, (projection_dim, projection_dim),
                               minval=-bound, maxval=bound)
        b = jax.random.uniform(kb, (1, projection_dim),
                               minval=-bound, maxval=bound)
        g = jnp.ones((1, projection_dim), jnp.float32)    # LayerNorm gamma
        bt = jnp.zeros((1, projection_dim), jnp.float32)  # LayerNorm beta
        layers.append((w, b, g, bt))
    return {"first_w": first_w, "first_b": first_b, "layers": layers}


def projection_fwd(x, params):
    B, H = x.shape
    P = params["first_w"].shape[1]
    out = _first_linear_call(B, H, P)(x, params["first_w"], params["first_b"])
    layer_call = _proj_layer_call(B, P)
    for (w, b, g, bt) in params["layers"]:
        out = layer_call(out, w, b, g, bt)
    return out


# ----------------------------------------------------------------------------
# Image_Encoder_ResNet forward
# ----------------------------------------------------------------------------
def image_encoder_fwd(params, image1_nchw, image2_nchw):
    x1 = jnp.transpose(image1_nchw, (0, 2, 3, 1))      # NCHW -> NHWC
    x2 = jnp.transpose(image2_nchw, (0, 2, 3, 1))
    x_pair = jnp.stack([x1, x2], axis=0).astype(jnp.bfloat16)   # (2,B,H,W,3)
    feats = resnet50_pair_fwd(x_pair, params["resnet_pair"])    # (2, B, 2048)
    concat = jnp.concatenate([feats[0], feats[1]], axis=1)      # cat(dim=1).view(B,4096)
    return projection_fwd(concat, params["projection"])


if __name__ == "__main__":
    key = jax.random.PRNGKey(0)
    kp, kr1, kr2, ki1, ki2 = jax.random.split(key, 5)

    B = 2
    NUM_PROJECTION_LAYERS = 2
    IMG_HIDDEN_DIM = 4096          # 2 x 2048 ResNet50 features
    PROJECTION_DIM = 128
    DROPOUT_RATE = 0.0             # eval-mode / zero dropout

    params = {
        "resnet_pair": make_resnet50_pair(kr1, kr2),
        "projection": make_projection(kp, NUM_PROJECTION_LAYERS,
                                      IMG_HIDDEN_DIM, PROJECTION_DIM),
    }

    image1 = jax.random.normal(ki1, (B, 3, 16, 16), jnp.float32)
    image2 = jax.random.normal(ki2, (B, 3, 16, 16), jnp.float32)

    out = image_encoder_fwd(params, image1, image2)
    jax.block_until_ready(out)
    assert out.shape == (B, PROJECTION_DIM)
    assert out.dtype == jnp.float32
    print("KERNEL_OK")
</pallas_src>

<mosaic_0001>
module attributes {stable_mosaic.version = 11 : i64} {
  func.func @kernel(%arg0: i32, %arg1: i32, %arg2: i32, %arg3: i32, %arg4: memref<1x128x256xbf16, #tpu.memory_space<vmem>>, %arg5: memref<1x256x128xbf16, #tpu.memory_space<vmem>>, %arg6: memref<1x1x128xf32, #tpu.memory_space<vmem>>, %arg7: memref<1x128x128xbf16, #tpu.memory_space<vmem>>, %arg8: memref<128x128xf32, #tpu.memory_space<vmem>>) attributes {dimension_semantics = [#tpu.dimension_semantics<parallel>, #tpu.dimension_semantics<parallel>, #tpu.dimension_semantics<parallel>, #tpu.dimension_semantics<arbitrary>], iteration_bounds = array<i64: 2, 1, 1, 1>, scalar_prefetch = 0 : i64, scratch_operands = 1 : i64, tpu.core_type = #tpu.core_type<tc>, window_params = [{transform_indices = @transform_0, window_bounds = array<i64: 1, 128, 256>}, {transform_indices = @transform_1, window_bounds = array<i64: 1, 256, 128>}, {transform_indices = @transform_2, window_bounds = array<i64: 1, 1, 128>}, {transform_indices = @transform_3, window_bounds = array<i64: 1, 128, 128>}]} {
    %c0_i32 = arith.constant 0 : i32
    %0 = arith.cmpi eq, %arg3, %c0_i32 : i32
    %1 = arith.extui %0 : i1 to i32
    %c0_i32_0 = arith.constant 0 : i32
    %2 = arith.cmpi ne, %1, %c0_i32_0 : i32
    scf.if %2 {
      %cst_12 = arith.constant 0.000000e+00 : f32
      %14 = vector.broadcast %cst_12 : f32 to vector<128x128xf32>
      %c0_13 = arith.constant 0 : index
      %c0_14 = arith.constant 0 : index
      %15 = vector.load %arg8[%c0_13, %c0_14] : memref<128x128xf32, #tpu.memory_space<vmem>>, vector<128x128xf32>
      tpu.vector_store %arg8[%c0_13, %c0_14], %14 {strides = array<i32>} : memref<128x128xf32, #tpu.memory_space<vmem>>, vector<128x128xf32>,
    } else {
    }
    %c0 = arith.constant 0 : index
    %c0_1 = arith.constant 0 : index
    %3 = vector.load %arg8[%c0, %c0_1] : memref<128x128xf32, #tpu.memory_space<vmem>>, vector<128x128xf32>
    %c0_2 = arith.constant 0 : index
    %c0_3 = arith.constant 0 : index
    %c0_4 = arith.constant 0 : index
    %4 = vector.load %arg4[%c0_2, %c0_3, %c0_4] : memref<1x128x256xbf16, #tpu.memory_space<vmem>>, vector<1x128x256xbf16>
    %5 = vector.shape_cast %4 : vector<1x128x256xbf16> to vector<128x256xbf16>
    %c0_5 = arith.constant 0 : index
    %c0_6 = arith.constant 0 : index
    %c0_7 = arith.constant 0 : index
    %6 = vector.load %arg5[%c0_5, %c0_6, %c0_7] : memref<1x256x128xbf16, #tpu.memory_space<vmem>>, vector<1x256x128xbf16>
    %7 = vector.shape_cast %6 : vector<1x256x128xbf16> to vector<256x128xbf16>
    %cst = arith.constant dense<0.000000e+00> : vector<128x128xf32>
    %8 = tpu.matmul %5, %7, %cst {dimension_numbers = #tpu.dot_dimension_numbers<[1], [0], [0], [1], [0, 0, 1, 1], [], []>} : vector<128x256xbf16>, vector<256x128xbf16>, vector<128x128xf32> -> vector<128x128xf32>
    %9 = arith.addf %3, %8 : vector<128x128xf32>
    %c0_8 = arith.constant 0 : index
    %c0_9 = arith.constant 0 : index
    %10 = vector.load %arg8[%c0_8, %c0_9] : memref<128x128xf32, #tpu.memory_space<vmem>>, vector<128x128xf32>
    tpu.vector_store %arg8[%c0_8, %c0_9], %9 {strides = array<i32>} : memref<128x128xf32, #tpu.memory_space<vmem>>, vector<128x128xf32>,
    %c0_i32_10 = arith.constant 0 : i32
    %11 = arith.cmpi eq, %arg3, %c0_i32_10 : i32
    %12 = arith.extui %11 : i1 to i32
    %c0_i32_11 = arith.constant 0 : i32
    %13 = arith.cmpi ne, %12, %c0_i32_11 : i32
    scf.if %13 {
      %c0_12 = arith.constant 0 : index
      %c0_13 = arith.constant 0 : index
      %14 = vector.load %arg8[%c0_12, %c0_13] : memref<128x128xf32, #tpu.memory_space<vmem>>, vector<128x128xf32>
      %c0_14 = arith.constant 0 : index
      %c0_15 = arith.constant 0 : index
      %c0_16 = arith.constant 0 : index
      %15 = vector.load %arg6[%c0_14, %c0_15, %c0_16] : memref<1x1x128xf32, #tpu.memory_space<vmem>>, vector<1x1x128xf32>
      %16 = vector.shape_cast %15 : vector<1x1x128xf32> to vector<1x128xf32>
      %17 = vector.broadcast %16 : vector<1x128xf32> to vector<128x128xf32>
      %18 = arith.addf %14, %17 : vector<128x128xf32>
      %cst_17 = arith.constant 0.000000e+00 : f32
      %19 = vector.broadcast %cst_17 : f32 to vector<128x128xf32>
      %20 = arith.maximumf %18, %19 : vector<128x128xf32>
      %21 = arith.truncf %20 : vector<128x128xf32> to vector<128x128xbf16>
      %c0_18 = arith.constant 0 : index
      %c0_19 = arith.constant 0 : index
      %c0_20 = arith.constant 0 : index
      %22 = vector.load %arg7[%c0_18, %c0_19, %c0_20] : memref<1x128x128xbf16, #tpu.memory_space<vmem>>, vector<1x128x128xbf16>
      %23 = vector.shape_cast %22 : vector<1x128x128xbf16> to vector<128x128xbf16>
      %24 = vector.shape_cast %21 : vector<128x128xbf16> to vector<1x128x128xbf16>
      tpu.vector_store %arg7[%c0_18, %c0_19, %c0_20], %24 {strides = array<i32>} : memref<1x128x128xbf16, #tpu.memory_space<vmem>>, vector<1x128x128xbf16>,
    } else {
    }
    return
  }
  func.func @transform_0(%arg0: i32, %arg1: i32, %arg2: i32, %arg3: i32) -> (i32, i32, i32) {
    %c0_i32 = arith.constant 0 : i32
    return %arg0, %arg1, %arg3 : i32, i32, i32
  }
  func.func @transform_1(%arg0: i32, %arg1: i32, %arg2: i32, %arg3: i32) -> (i32, i32, i32) {
    %c0_i32 = arith.constant 0 : i32
    return %arg0, %arg3, %arg2 : i32, i32, i32
  }
  func.func @transform_2(%arg0: i32, %arg1: i32, %arg2: i32, %arg3: i32) -> (i32, i32, i32) {
    %c0_i32 = arith.constant 0 : i32
    %c0_i32_0 = arith.constant 0 : i32
    return %arg0, %c0_i32, %arg2 : i32, i32, i32
  }
  func.func @transform_3(%arg0: i32, %arg1: i32, %arg2: i32, %arg3: i32) -> (i32, i32, i32) {
    %c0_i32 = arith.constant 0 : i32
    return %arg0, %arg1, %arg2 : i32, i32, i32
  }
}

</mosaic_0001>

<llo_original>
// kernel: tpu_custom_call.1
$region0: #{tpu_custom_call.1}
  #allocation0 [shape = 'u32[]', space=smem, size = 0x4, offset = 0x4, fixed_abs, tag = 'smem constant byte address 0x4 - core index']
  #allocation1 [shape = 'u32[144,128]{1,0:T(1,128)}', space=vmem, size = 0x12000, scoped, tag = 'internal scratch']
  #allocation2 [shape = 'f32[128,128]{1,0:T(8,128)}', space=vmem, size = 0x10000, scoped, tag = 'scratch operand']
  %s0 = inlined_call_operand.hbm [shape: bf16[2,128,256], index: 0, kind: input, shape index: {}]
  %s1 = inlined_call_operand.hbm [shape: bf16[2,256,128], index: 1, kind: input, shape index: {}]
  %s2 = inlined_call_operand.vmem [shape: f32[2,1,128], index: 2, kind: input, shape index: {}]
  %s3 = inlined_call_operand.hbm [shape: bf16[2,128,128], index: 3, kind: output, shape index: {}]
  %s4 = sld [smem:[#allocation0]]
  $region61: #{tpu_custom_call.1} parent=0
    _
  %s6 = ssub.s32 1, %s4
  %s7 = scalar_select 0, %s6, %s4
  $region1: #{tpu_custom_call.1} parent=0
    #allocation3 [shape = 'u8[131072]{0}', space=vmem, size = 0x20000, scoped, tag = 'input window, operand 0']
    #allocation4 [shape = 's32[2]{0}', space=sflag, size = 0x8, scoped, tag = 'scoped memory for tpu_custom_call.1']
    #allocation5 [shape = 's32[2]{0}', space=sflag, size = 0x8, scoped, tag = 'scoped memory for tpu_custom_call.1']
    #allocation6 [shape = 'u8[131072]{0}', space=vmem, size = 0x20000, scoped, tag = 'input window, operand 1']
    #allocation7 [shape = 's32[2]{0}', space=sflag, size = 0x8, scoped, tag = 'scoped memory for tpu_custom_call.1']
    #allocation8 [shape = 'u8[65536]{0}', space=vmem, size = 0x10000, scoped, tag = 'output window, operand 0']
    %8 = vsyncpa [#allocation4], 0
    %s9 = scalar_lea.sflag [#allocation4], 1
    %10 = vsyncpa %s9, 0
    %11 = vsyncpa [#allocation7], 0
    %s12 = scalar_lea.sflag [#allocation7], 1
    %13 = vsyncpa %s12, 0
    %14 = vsyncpa [#allocation5], 0
    %s15 = scalar_lea.sflag [#allocation5], 1
    %16 = vsyncpa %s15, 0
    loop: start=0, step=1, limit=4
    $region2: #{tpu_custom_call.1} parent=1 // loop_pre_header
      _
    $region3: #{tpu_custom_call.1} parent=1 // loop_header
      %s18 = sphi 0, %s22
      %p19 = scmp.ge.s32.totalorder %s18, 4
      %s25 = sphi 0, %s51
      %s26 = sphi 0, %s47
      %s27 = sphi 0, %s43
      %s28 = sphi 0, %s39
      %s29 = sphi 0, %s25
      %s30 = sphi 0, %s26
      %s31 = sphi 0, %s27
      %s32 = sphi 0, %s28
      %s33 = sphi 0, %s29
      %s34 = sphi 0, %s30
      %s35 = sphi 0, %s31
      %s36 = sphi 0, %s32
      %s58 = sphi 0, %s60
      %s61 = sphi 0, %s58
      %s62 = sphi 0, %s61
      %s78 = sphi 0, %s62
      %s88 = sphi 0, %s90
      %s91 = sphi 0, %s88
      %s92 = sphi 0, %s91
      %s108 = sphi 0, %s92
      %s116 = sphi 0, %s118
      %s119 = sphi 0, %s116
      %s120 = sphi 0, %s119
      %s136 = sphi 0, %s120
      %s146 = sphi 0, %s148
      %s149 = sphi 0, %s146
      %s150 = sphi 0, %s149
      %s166 = sphi 0, %s150
    $region4: #{tpu_custom_call.1} parent=1 // loop_header_branch
      %21 = sbr.rel (%p19) target = $region8
    $region5: #{tpu_custom_call.1} parent=1 // loop_body
      %s23 = ssub.s32 %s18, 1
      %s24 = ssub.s32 %s18, 2
      %s37 = sadd.s32 1, %s28
      %p38 = scmp.ge.s32.totalorder %s37, 1
      %s39 = scalar_select %p38, 0, %s37
      %s40 = sadd.s32 1, %s27
      %s41 = scalar_select %p38, %s40, %s27
      %p42 = scmp.ge.s32.totalorder %s41, 1
      %s43 = scalar_select %p42, 0, %s41
      %s44 = sadd.s32 1, %s26
      %s45 = scalar_select %p42, %s44, %s26
      %p46 = scmp.ge.s32.totalorder %s45, 1
      %s47 = scalar_select %p46, 0, %s45
      %s48 = sadd.s32 1, %s25
      %s49 = scalar_select %p46, %s48, %s25
      %p50 = scmp.ge.s32.totalorder %s49, 2
      %s51 = scalar_select %p50, 0, %s49
      %s52 = ssub.s32 %s25, %s51
      %s53 = ssub.s32 %s26, %s47
      %s54 = sor.u32 %s52, %s53
      %s55 = ssub.s32 %s28, %s39
      %s56 = sor.u32 %s54, %s55
      %p57 = scmp.eq.s32.totalorder %s56, 0
      %s59 = sadd.s32 %s58, 1
      %s60 = scalar_select %p57, %s58, %s59
      %p63 = pneg %p57
      %p64 = scmp.eq.s32.totalorder %s18, 1
      %p65 = por %p63, %p64
      %p66 = scmp.ne.s32.totalorder %s58, %s61
      %p67 = scmp.eq.s32.totalorder %s18, 0
      %p68 = por %p66, %p67
      %p69 = scmp.ne.s32.totalorder %s58, %s61
      %p70 = scmp.eq.s32.totalorder %s23, 1
      %p71 = por %p69, %p70
      %p72 = scmp.ne.s32.totalorder %s61, %s62
      %p73 = scmp.eq.s32.totalorder %s23, 0
      %p74 = por %p72, %p73
      %p75 = scmp.ne.s32.totalorder %s61, %s62
      %p76 = scmp.eq.s32.totalorder %s24, 1
      %p77 = por %p75, %p76
      %p79 = scmp.ne.s32.totalorder %s62, %s78
      %p80 = scmp.eq.s32.totalorder %s24, 0
      %p81 = por %p79, %p80
      %s82 = ssub.s32 %s25, %s51
      %s83 = ssub.s32 %s28, %s39
      %s84 = sor.u32 %s82, %s83
      %s85 = ssub.s32 %s27, %s43
      %s86 = sor.u32 %s84, %s85
      %p87 = scmp.eq.s32.totalorder %s86, 0
      %s89 = sadd.s32 %s88, 1
      %s90 = scalar_select %p87, %s88, %s89
      %p93 = pneg %p87
      %p94 = scmp.eq.s32.totalorder %s18, 1
      %p95 = por %p93, %p94
      %p96 = scmp.ne.s32.totalorder %s88, %s91
      %p97 = scmp.eq.s32.totalorder %s18, 0
      %p98 = por %p96, %p97
      %p99 = scmp.ne.s32.totalorder %s88, %s91
      %p100 = scmp.eq.s32.totalorder %s23, 1
      %p101 = por %p99, %p100
      %p102 = scmp.ne.s32.totalorder %s91, %s92
      %p103 = scmp.eq.s32.totalorder %s23, 0
      %p104 = por %p102, %p103
      %p105 = scmp.ne.s32.totalorder %s91, %s92
      %p106 = scmp.eq.s32.totalorder %s24, 1
      %p107 = por %p105, %p106
      %p109 = scmp.ne.s32.totalorder %s92, %s108
      %p110 = scmp.eq.s32.totalorder %s24, 0
      %p111 = por %p109, %p110
      %s112 = ssub.s32 %s25, %s51
      %s113 = ssub.s32 %s27, %s43
      %s114 = sor.u32 %s112, %s113
      %p115 = scmp.eq.s32.totalorder %s114, 0
      %s117 = sadd.s32 %s116, 1
      %s118 = scalar_select %p115, %s116, %s117
      %p121 = pneg %p115
      %p122 = scmp.eq.s32.totalorder %s18, 1
      %p123 = por %p121, %p122
      %p124 = scmp.ne.s32.totalorder %s116, %s119
      %p125 = scmp.eq.s32.totalorder %s18, 0
      %p126 = por %p124, %p125
      %p127 = scmp.ne.s32.totalorder %s116, %s119
      %p128 = scmp.eq.s32.totalorder %s23, 1
      %p129 = por %p127, %p128
      %p130 = scmp.ne.s32.totalorder %s119, %s120
      %p131 = scmp.eq.s32.totalorder %s23, 0
      %p132 = por %p130, %p131
      %p133 = scmp.ne.s32.totalorder %s119, %s120
      %p134 = scmp.eq.s32.totalorder %s24, 1
      %p135 = por %p133, %p134
      %p137 = scmp.ne.s32.totalorder %s120, %s136
      %p138 = scmp.eq.s32.totalorder %s24, 0
      %p139 = por %p137, %p138
      %s140 = ssub.s32 %s25, %s51
      %s141 = ssub.s32 %s26, %s47
      %s142 = sor.u32 %s140, %s141
      %s143 = ssub.s32 %s27, %s43
      %s144 = sor.u32 %s142, %s143
      %p145 = scmp.eq.s32.totalorder %s144, 0
      %s147 = sadd.s32 %s146, 1
      %s148 = scalar_select %p145, %s146, %s147
      %p151 = pneg %p145
      %p152 = scmp.eq.s32.totalorder %s18, 1
      %p153 = por %p151, %p152
      %p154 = scmp.ne.s32.totalorder %s146, %s149
      %p155 = scmp.eq.s32.totalorder %s18, 0
      %p156 = por %p154, %p155
      %p157 = scmp.ne.s32.totalorder %s146, %s149
      %p158 = scmp.eq.s32.totalorder %s23, 1
      %p159 = por %p157, %p158
      %p160 = scmp.ne.s32.totalorder %s149, %s150
      %p161 = scmp.eq.s32.totalorder %s23, 0
      %p162 = por %p160, %p161
      %p163 = scmp.ne.s32.totalorder %s149, %s150
      %p164 = scmp.eq.s32.totalorder %s24, 1
      %p165 = por %p163, %p164
      %p167 = scmp.ne.s32.totalorder %s150, %s166
      %p168 = scmp.eq.s32.totalorder %s24, 0
      %p169 = por %p167, %p168
      %p170 = scmp.le.s32.totalorder 1, %s18
      %p171 = scmp.lt.s32.totalorder %s18, 3
      %p172 = pnand %p170, %p171
      %p173 = pneg %p172
      // Predicated region
      $region9: #{tpu_custom_call.1} parent=5 // pred_check
        _
      $region10: #{tpu_custom_call.1} parent=5 // pred_check_branch
        %175 = sbr.rel (%p172) target = $region12
      $region11: #{tpu_custom_call.1} parent=5 // pred_region
        %s176 = ssub.s32 %s18, 1
      $region12: #{tpu_custom_call.1} parent=5 // pred_fallthru
        _
      %p177 = scmp.lt.s32.totalorder %s18, 2
      // Predicated region
      $region13: #{tpu_custom_call.1} parent=5 // pred_check
        %p178 = pneg %p177
      $region14: #{tpu_custom_call.1} parent=5 // pred_check_branch
        %180 = sbr.rel (%p178) target = $region16
      $region15: #{tpu_custom_call.1} parent=5 // pred_region
        // Predicated region
        $region17: #{tpu_custom_call.1} parent=15 // pred_check
          %p181 = pneg %p68
        $region18: #{tpu_custom_call.1} parent=15 // pred_check_branch
          %183 = sbr.rel (%p181) target = $region20
        $region19: #{tpu_custom_call.1} parent=15 // pred_region
          %s184 = sand.u32 %s58, 1
          %s185 = scalar_lea.sflag [#allocation4], %s184
          %s186 = sand.u32 %s58, 1
          %s187 = smul.addr %s186, 128
          %s188 = scalar_lea.vmem [#allocation3], %s187
          %s189 = smul.u32 16, %s26
          %s190 = smul.u32 2, %s28
          %s192 = ssub.s32 2048, 2048
          %193 = vsyncadd %s185, %s192
          %s194 = smul.addr %s189, 2
          %s195 = sadd.s32 %s190, %s194
          %s196 = smul.addr %s25, 32
          %s197 = sadd.s32 %s195, %s196
          %s198 = smul.addr %s197, 64
          %s199 = scalar_lea.hbm %s0, %s198
          %s200 = sshll.u32 %s188, 4
          %s201 = int_to_ptr.vmem [resolvable:$true] %s200
          %206 = dma.hbm_to_vmem [thread:$0]  %s199, 2048, %s201, %s185, 128, 128, 8
        $region20: #{tpu_custom_call.1} parent=15 // pred_fallthru
          _
        // Predicated region
        $region21: #{tpu_custom_call.1} parent=15 // pred_check
          %p207 = pneg %p98
        $region22: #{tpu_custom_call.1} parent=15 // pred_check_branch
          %209 = sbr.rel (%p207) target = $region24
        $region23: #{tpu_custom_call.1} parent=15 // pred_region
          %s210 = sand.u32 %s88, 1
          %s211 = scalar_lea.sflag [#allocation7], %s210
          %s212 = sand.u32 %s88, 1
          %s213 = smul.addr %s212, 128
          %s214 = scalar_lea.vmem [#allocation6], %s213
          %s215 = smul.u32 32, %s28
          %s217 = ssub.s32 2048, 2048
          %218 = vsyncadd %s211, %s217
          %s219 = sadd.s32 %s27, %s215
          %s220 = smul.addr %s25, 32
          %s221 = sadd.s32 %s219, %s220
          %s222 = smul.addr %s221, 64
          %s223 = scalar_lea.hbm %s1, %s222
          %s224 = sshll.u32 %s214, 4
          %s225 = int_to_ptr.vmem [resolvable:$true] %s224
          %230 = dma.hbm_to_vmem [thread:$0]  %s223, 2048, %s225, %s211, 64, 64, 4
        $region24: #{tpu_custom_call.1} parent=15 // pred_fallthru
          _
        // Predicated region
        $region25: #{tpu_custom_call.1} parent=15 // pred_check
          %p231 = pneg %p126
        $region26: #{tpu_custom_call.1} parent=15 // pred_check_branch
          %233 = sbr.rel (%p231) target = $region28
        $region27: #{tpu_custom_call.1} parent=15 // pred_region
          %p234 = scmp.lt.s32.totalorder %s25, 1
          %s235 = scalar_select %p234, %s25, 1
          %p236 = scmp.lt.s32.totalorder %s27, 0
          %s237 = scalar_select %p236, %s27, 0
          %s238 = sadd.s32 %s237, %s235
          %s239 = scalar_lea.vmem %s2, %s238
        $region28: #{tpu_custom_call.1} parent=15 // pred_fallthru
          _
      $region16: #{tpu_custom_call.1} parent=5 // pred_fallthru
        _
      %p240 = scmp.le.s32.totalorder 1, %s18
      %p241 = scmp.lt.s32.totalorder %s18, 3
      %p242 = pnand %p240, %p241
      %p243 = pneg %p242
      // Predicated region
      $region29: #{tpu_custom_call.1} parent=5 // pred_check
        _
      $region30: #{tpu_custom_call.1} parent=5 // pred_check_branch
        %245 = sbr.rel (%p242) target = $region32
      $region31: #{tpu_custom_call.1} parent=5 // pred_region
        %s246 = ssub.s32 %s18, 1
        %s247 = sand.u32 %s61, 1
        %s248 = scalar_lea.sflag [#allocation4], %s247
        %s249 = sand.u32 %s61, 1
        %s250 = smul.addr %s249, 128
        %s251 = scalar_lea.vmem [#allocation3], %s250
        // Predicated region
        $region33: #{tpu_custom_call.1} parent=31 // pred_check
          %p252 = pneg %p74
        $region34: #{tpu_custom_call.1} parent=31 // pred_check_branch
          %254 = sbr.rel (%p252) target = $region36
        $region35: #{tpu_custom_call.1} parent=31 // pred_region
          %255 = dma.done %s248, 2048
        $region36: #{tpu_custom_call.1} parent=31 // pred_fallthru
          _
        %s256 = sand.u32 %s91, 1
        %s257 = scalar_lea.sflag [#allocation7], %s256
        %s258 = sand.u32 %s91, 1
        %s259 = smul.addr %s258, 128
        %s260 = scalar_lea.vmem [#allocation6], %s259
        // Predicated region
        $region37: #{tpu_custom_call.1} parent=31 // pred_check
          %p261 = pneg %p104
        $region38: #{tpu_custom_call.1} parent=31 // pred_check_branch
          %263 = sbr.rel (%p261) target = $region40
        $region39: #{tpu_custom_call.1} parent=31 // pred_region
          %264 = dma.done %s257, 2048
        $region40: #{tpu_custom_call.1} parent=31 // pred_fallthru
          _
        %s265 = sand.u32 %s61, 1
        %s266 = scalar_lea.sflag [#allocation4], %s265
        %s267 = sand.u32 %s61, 1
        %s268 = smul.addr %s267, 128
        %s269 = scalar_lea.vmem [#allocation3], %s268
        %p270 = pneg %p74
        %p271 = pneg %p71
        %s272 = sand.u32 %s91, 1
        %s273 = scalar_lea.sflag [#allocation7], %s272
        %s274 = sand.u32 %s91, 1
        %s275 = smul.addr %s274, 128
        %s276 = scalar_lea.vmem [#allocation6], %s275
        %p277 = pneg %p104
        %p278 = pneg %p101
        %p279 = scmp.lt.s32.totalorder %s29, 1
        %s280 = scalar_select %p279, %s29, 1
        %p281 = scmp.lt.s32.totalorder %s31, 0
        %s282 = scalar_select %p281, %s31, 0
        %s283 = sadd.s32 %s282, %s280
        %s284 = scalar_lea.vmem %s2, %s283
        %p285 = pneg %p132
        %p286 = pneg %p129
        %p287 = pneg %p162
        %p288 = pneg %p159
        %s289 = sand.u32 %s149, 1
        %s290 = scalar_lea.sflag [#allocation5], %s289
        %s291 = sand.u32 %s149, 1
        %s292 = smul.addr %s291, 64
        %s293 = scalar_lea.vmem [#allocation8], %s292
        %s294 = smul.u32 16, %s30
        %s295 = smul.u32 2, %s32
        %s296 = smul.u32 32, %s32
        %p297 = scmp.lt.s32.totalorder %s29, 1
        %s298 = scalar_select %p297, %s29, 1
        %p299 = scmp.lt.s32.totalorder %s31, 0
        %s300 = scalar_select %p299, %s31, 0
        %s301 = sadd.s32 %s300, %s298
        %s302 = scalar_lea.vmem %s2, %s301
        %s303 = smul.u32 16, %s30
        %p305 = scmp.eq.s32.totalorder %s32, 0
        // Predicated region
        $region41: #{tpu_custom_call.1} parent=31 // pred_check
          %p306 = pneg %p305
        $region42: #{tpu_custom_call.1} parent=31 // pred_check_branch
          %308 = sbr.rel (%p306) target = $region44
        $region43: #{tpu_custom_call.1} parent=31 // pred_region
          %309 = vst [vmem:[#allocation2] sm:$0xff] 0.0
          %310 = vst [vmem:[#allocation2 + $0x8] sm:$0xff] 0.0
          %311 = vst [vmem:[#allocation2 + $0x10] sm:$0xff] 0.0
          %312 = vst [vmem:[#allocation2 + $0x18] sm:$0xff] 0.0
          %313 = vst [vmem:[#allocation2 + $0x20] sm:$0xff] 0.0
          %314 = vst [vmem:[#allocation2 + $0x28] sm:$0xff] 0.0
          %315 = vst [vmem:[#allocation2 + $0x30] sm:$0xff] 0.0
          %316 = vst [vmem:[#allocation2 + $0x38] sm:$0xff] 0.0
          %317 = vst [vmem:[#allocation2 + $0x40] sm:$0xff] 0.0
          %318 = vst [vmem:[#allocation2 + $0x48] sm:$0xff] 0.0
          %319 = vst [vmem:[#allocation2 + $0x50] sm:$0xff] 0.0
          %320 = vst [vmem:[#allocation2 + $0x58] sm:$0xff] 0.0
          %321 = vst [vmem:[#allocation2 + $0x60] sm:$0xff] 0.0
          %322 = vst [vmem:[#allocation2 + $0x68] sm:$0xff] 0.0
          %323 = vst [vmem:[#allocation2 + $0x70] sm:$0xff] 0.0
          %324 = vst [vmem:[#allocation2 + $0x78] sm:$0xff] 0.0
        $region44: #{tpu_custom_call.1} parent=31 // pred_fallthru
          _
        %v325 = vld [vmem:[#allocation2] sm:$0xff]
        %v326 = vld [vmem:[#allocation2 + $0x8] sm:$0xff]
        %v327 = vld [vmem:[#allocation2 + $0x10] sm:$0xff]
        %v328 = vld [vmem:[#allocation2 + $0x18] sm:$0xff]
        %v329 = vld [vmem:[#allocation2 + $0x20] sm:$0xff]
        %v330 = vld [vmem:[#allocation2 + $0x28] sm:$0xff]
        %v331 = vld [vmem:[#allocation2 + $0x30] sm:$0xff]
        %v332 = vld [vmem:[#allocation2 + $0x38] sm:$0xff]
        %v333 = vld [vmem:[#allocation2 + $0x40] sm:$0xff]
        %v334 = vld [vmem:[#allocation2 + $0x48] sm:$0xff]
        %v335 = vld [vmem:[#allocation2 + $0x50] sm:$0xff]
        %v336 = vld [vmem:[#allocation2 + $0x58] sm:$0xff]
        %v337 = vld [vmem:[#allocation2 + $0x60] sm:$0xff]
        %v338 = vld [vmem:[#allocation2 + $0x68] sm:$0xff]
        %v339 = vld [vmem:[#allocation2 + $0x70] sm:$0xff]
        %v340 = vld [vmem:[#allocation2 + $0x78] sm:$0xff]
        %v341 = vld [vmem:[%s251] sm:$0xff]
        %v342 = vld [vmem:[%s251 + $0x8] sm:$0xff]
        %v343 = vld [vmem:[%s251 + $0x10] sm:$0xff]
        %v344 = vld [vmem:[%s251 + $0x18] sm:$0xff]
        %v345 = vld [vmem:[%s251 + $0x20] sm:$0xff]
        %v346 = vld [vmem:[%s251 + $0x28] sm:$0xff]
        %v347 = vld [vmem:[%s251 + $0x30] sm:$0xff]
        %v348 = vld [vmem:[%s251 + $0x38] sm:$0xff]
        %v349 = vld [vmem:[%s251 + $0x40] sm:$0xff]
        %v350 = vld [vmem:[%s251 + $0x48] sm:$0xff]
        %v351 = vld [vmem:[%s251 + $0x50] sm:$0xff]
        %v352 = vld [vmem:[%s251 + $0x58] sm:$0xff]
        %v353 = vld [vmem:[%s251 + $0x60] sm:$0xff]
        %v354 = vld [vmem:[%s251 + $0x68] sm:$0xff]
        %v355 = vld [vmem:[%s251 + $0x70] sm:$0xff]
        %v356 = vld [vmem:[%s251 + $0x78] sm:$0xff]
        %v357 = vld [vmem:[%s260] sm:$0xf]
        %v358 = vld [vmem:[%s260 + $0x4] sm:$0xf]
        %v359 = vld [vmem:[%s260 + $0x8] sm:$0xf]
        %v360 = vld [vmem:[%s260 + $0xc] sm:$0xf]
        %v361 = vld [vmem:[%s260 + $0x10] sm:$0xf]
        %v362 = vld [vmem:[%s260 + $0x14] sm:$0xf]
        %v363 = vld [vmem:[%s260 + $0x18] sm:$0xf]
        %v364 = vld [vmem:[%s260 + $0x1c] sm:$0xf]
        %v365 = vld [vmem:[%s260 + $0x20] sm:$0xf]
        %v366 = vld [vmem:[%s260 + $0x24] sm:$0xf]
        %v367 = vld [vmem:[%s260 + $0x28] sm:$0xf]
        %v368 = vld [vmem:[%s260 + $0x2c] sm:$0xf]
        %v369 = vld [vmem:[%s260 + $0x30] sm:$0xf]
        %v370 = vld [vmem:[%s260 + $0x34] sm:$0xf]
        %v371 = vld [vmem:[%s260 + $0x38] sm:$0xf]
        %v372 = vld [vmem:[%s260 + $0x3c] sm:$0xf]
        %v373 = vld [vmem:[%s260 + $0x40] sm:$0xf]
        %v374 = vld [vmem:[%s260 + $0x44] sm:$0xf]
        %v375 = vld [vmem:[%s260 + $0x48] sm:$0xf]
        %v376 = vld [vmem:[%s260 + $0x4c] sm:$0xf]
        %v377 = vld [vmem:[%s260 + $0x50] sm:$0xf]
        %v378 = vld [vmem:[%s260 + $0x54] sm:$0xf]
        %v379 = vld [vmem:[%s260 + $0x58] sm:$0xf]
        %v380 = vld [vmem:[%s260 + $0x5c] sm:$0xf]
        %v381 = vld [vmem:[%s260 + $0x60] sm:$0xf]
        %v382 = vld [vmem:[%s260 + $0x64] sm:$0xf]
        %v383 = vld [vmem:[%s260 + $0x68] sm:$0xf]
        %v384 = vld [vmem:[%s260 + $0x6c] sm:$0xf]
        %v385 = vld [vmem:[%s260 + $0x70] sm:$0xf]
        %v386 = vld [vmem:[%s260 + $0x74] sm:$0xf]
        %v387 = vld [vmem:[%s260 + $0x78] sm:$0xf]
        %v388 = vld [vmem:[%s260 + $0x7c] sm:$0xf]
        %v405 = vunpack.c.l.b16 %v341
        %v406 = vunpack.c.h.b16 %v341
        %v407 = vunpack.c.l.b16 %v342
        %v408 = vunpack.c.h.b16 %v342
        %v409 = vunpack.c.l.b16 %v343
        %v410 = vunpack.c.h.b16 %v343
        %v411 = vunpack.c.l.b16 %v344
        %v412 = vunpack.c.h.b16 %v344
        %v413 = vunpack.c.l.b16 %v345
        %v414 = vunpack.c.h.b16 %v345
        %v415 = vunpack.c.l.b16 %v346
        %v416 = vunpack.c.h.b16 %v346
        %v417 = vunpack.c.l.b16 %v347
        %v418 = vunpack.c.h.b16 %v347
        %v419 = vunpack.c.l.b16 %v348
        %v420 = vunpack.c.h.b16 %v348
        %v421 = vunpack.c.l.b16 %v349
        %v422 = vunpack.c.h.b16 %v349
        %v423 = vunpack.c.l.b16 %v350
        %v424 = vunpack.c.h.b16 %v350
        %v425 = vunpack.c.l.b16 %v351
        %v426 = vunpack.c.h.b16 %v351
        %v427 = vunpack.c.l.b16 %v352
        %v428 = vunpack.c.h.b16 %v352
        %v429 = vunpack.c.l.b16 %v353
        %v430 = vunpack.c.h.b16 %v353
        %v431 = vunpack.c.l.b16 %v354
        %v432 = vunpack.c.h.b16 %v354
        %v433 = vunpack.c.l.b16 %v355
        %v434 = vunpack.c.h.b16 %v355
        %v435 = vunpack.c.l.b16 %v356
        %v436 = vunpack.c.h.b16 %v356
        %v437 = vpack.c.b16 %v407, %v405
        %v438 = vpack.c.b16 %v408, %v406
        %v439 = vpack.c.b16 %v411, %v409
        %v440 = vpack.c.b16 %v412, %v410
        %v441 = vpack.c.b16 %v415, %v413
        %v442 = vpack.c.b16 %v416, %v414
        %v443 = vpack.c.b16 %v419, %v417
        %v444 = vpack.c.b16 %v420, %v418
        %v445 = vpack.c.b16 %v423, %v421
        %v446 = vpack.c.b16 %v424, %v422
        %v447 = vpack.c.b16 %v427, %v425
        %v448 = vpack.c.b16 %v428, %v426
        %v449 = vpack.c.b16 %v431, %v429
        %v450 = vpack.c.b16 %v432, %v430
        %v451 = vpack.c.b16 %v435, %v433
        %v452 = vpack.c.b16 %v436, %v434
        %v501 = vunpack.c.l.b16 %v357
        %v502 = vunpack.c.l.b16 %v358
        %v503 = vunpack.c.l.b16 %v359
        %v504 = vunpack.c.l.b16 %v360
        %v505 = vunpack.c.l.b16 %v361
        %v506 = vunpack.c.l.b16 %v362
        %v507 = vunpack.c.l.b16 %v363
        %v508 = vunpack.c.l.b16 %v364
        %v509 = vunpack.c.l.b16 %v365
        %v510 = vunpack.c.l.b16 %v366
        %v511 = vunpack.c.l.b16 %v367
        %v512 = vunpack.c.l.b16 %v368
        %v513 = vunpack.c.l.b16 %v369
        %v514 = vunpack.c.l.b16 %v370
        %v515 = vunpack.c.l.b16 %v371
        %v516 = vunpack.c.l.b16 %v372
        %v517 = vunpack.c.l.b16 %v373
        %v518 = vunpack.c.l.b16 %v374
        %v519 = vunpack.c.l.b16 %v375
        %v520 = vunpack.c.l.b16 %v376
        %v521 = vunpack.c.l.b16 %v377
        %v522 = vunpack.c.l.b16 %v378
        %v523 = vunpack.c.l.b16 %v379
        %v524 = vunpack.c.l.b16 %v380
        %v525 = vunpack.c.l.b16 %v381
        %v526 = vunpack.c.l.b16 %v382
        %v527 = vunpack.c.l.b16 %v383
        %v528 = vunpack.c.l.b16 %v384
        %v529 = vunpack.c.l.b16 %v385
        %v530 = vunpack.c.l.b16 %v386
        %v531 = vunpack.c.l.b16 %v387
        %v532 = vunpack.c.l.b16 %v388
        %v533 = vpack.c.b16 %v502, %v501
        %v534 = vpack.c.b16 %v504, %v503
        %v535 = vpack.c.b16 %v506, %v505
        %v536 = vpack.c.b16 %v508, %v507
        %v537 = vpack.c.b16 %v510, %v509
        %v538 = vpack.c.b16 %v512, %v511
        %v539 = vpack.c.b16 %v514, %v513
        %v540 = vpack.c.b16 %v516, %v515
        %v541 = vpack.c.b16 %v518, %v517
        %v542 = vpack.c.b16 %v520, %v519
        %v543 = vpack.c.b16 %v522, %v521
        %v544 = vpack.c.b16 %v524, %v523
        %v545 = vpack.c.b16 %v526, %v525
        %v546 = vpack.c.b16 %v528, %v527
        %v547 = vpack.c.b16 %v530, %v529
        %v548 = vpack.c.b16 %v532, %v531
        %565 = vmatprep.subr.bf16.mxu0 0
        %566 = vmatpush1.bf16.msra.mxu0 %v533
        %567 = vmatprep.subr.bf16.mxu0 0
        %568 = vmatpush1.bf16.msra.mxu0 %v534
        %569 = vmatprep.subr.bf16.mxu0 0
        %570 = vmatpush1.bf16.msra.mxu0 %v535
        %571 = vmatprep.subr.bf16.mxu0 0
        %572 = vmatpush1.bf16.msra.mxu0 %v536
        %573 = vmatprep.subr.bf16.mxu0 0
        %574 = vmatpush1.bf16.msra.mxu0 %v537
        %575 = vmatprep.subr.bf16.mxu0 0
        %576 = vmatpush1.bf16.msra.mxu0 %v538
        %577 = vmatprep.subr.bf16.mxu0 0
        %578 = vmatpush1.bf16.msra.mxu0 %v539
        %579 = vmatprep.subr.bf16.mxu0 0
        %580 = vmatpush1.bf16.msra.mxu0 %v540
        %581 = vmatprep.subr.bf16.mxu0 0
        %582 = vmatpush1.bf16.msra.mxu0 %v541
        %583 = vmatprep.subr.bf16.mxu0 0
        %584 = vmatpush1.bf16.msra.mxu0 %v542
        %585 = vmatprep.subr.bf16.mxu0 0
        %586 = vmatpush1.bf16.msra.mxu0 %v543
        %587 = vmatprep.subr.bf16.mxu0 0
        %588 = vmatpush1.bf16.msra.mxu0 %v544
        %589 = vmatprep.subr.bf16.mxu0 0
        %590 = vmatpush1.bf16.msra.mxu0 %v545
        %591 = vmatprep.subr.bf16.mxu0 0
        %592 = vmatpush1.bf16.msra.mxu0 %v546
        %593 = vmatprep.subr.bf16.mxu0 0
        %594 = vmatpush1.bf16.msra.mxu0 %v547
        %595 = vmatprep.subr.bf16.mxu0 0
        %596 = vmatpush1.bf16.msra.mxu0 %v548
        %597 = vmatprep.mubr.bf16.mxu0 %v438
        %598 = vmatmul.mubr.bf16.gmra.mrb[0].mxu0 %v437
        %v599 = vpop.f32.mrb[0].mxu0
        %v600 = vadd.f32 0.0, %v599
        %v601 = vpop.f32.mrb[0].mxu0
        %v602 = vpop.f32.mrb[0].mxu0
        %v603 = vadd.f32 0.0, %v602
        %v604 = vpop.f32.mrb[0].mxu0
        %605 = vmatprep.mubr.bf16.mxu0 %v440
        %606 = vmatmul.mubr.bf16.gmra.mrb[0].mxu0 %v439
        %v607 = vpop.f32.mrb[0].mxu0
        %v608 = vadd.f32 0.0, %v607
        %v609 = vpop.f32.mrb[0].mxu0
        %v610 = vpop.f32.mrb[0].mxu0
        %v611 = vadd.f32 0.0, %v610
        %v612 = vpop.f32.mrb[0].mxu0
        %613 = vmatprep.mubr.bf16.mxu0 %v442
        %614 = vmatmul.mubr.bf16.gmra.mrb[0].mxu0 %v441
        %v615 = vpop.f32.mrb[0].mxu0
        %v616 = vadd.f32 0.0, %v615
        %v617 = vpop.f32.mrb[0].mxu0
        %v618 = vpop.f32.mrb[0].mxu0
        %v619 = vadd.f32 0.0, %v618
        %v620 = vpop.f32.mrb[0].mxu0
        %621 = vmatprep.mubr.bf16.mxu0 %v444
        %622 = vmatmul.mubr.bf16.gmra.mrb[0].mxu0 %v443
        %v623 = vpop.f32.mrb[0].mxu0
        %v624 = vadd.f32 0.0, %v623
        %v625 = vpop.f32.mrb[0].mxu0
        %v626 = vpop.f32.mrb[0].mxu0
        %v627 = vadd.f32 0.0, %v626
        %v628 = vpop.f32.mrb[0].mxu0
        %629 = vmatprep.mubr.bf16.mxu0 %v446
        %630 = vmatmul.mubr.bf16.gmra.mrb[0].mxu0 %v445
        %v631 = vpop.f32.mrb[0].mxu0
        %v632 = vadd.f32 0.0, %v631
        %v633 = vpop.f32.mrb[0].mxu0
        %v634 = vpop.f32.mrb[0].mxu0
        %v635 = vadd.f32 0.0, %v634
        %v636 = vpop.f32.mrb[0].mxu0
        %637 = vmatprep.mubr.bf16.mxu0 %v448
        %638 = vmatmul.mubr.bf16.gmra.mrb[0].mxu0 %v447
        %v639 = vpop.f32.mrb[0].mxu0
        %v640 = vadd.f32 0.0, %v639
        %v641 = vpop.f32.mrb[0].mxu0
        %v642 = vpop.f32.mrb[0].mxu0
        %v643 = vadd.f32 0.0, %v642
        %v644 = vpop.f32.mrb[0].mxu0
        %645 = vmatprep.mubr.bf16.mxu0 %v450
        %646 = vmatmul.mubr.bf16.gmra.mrb[0].mxu0 %v449
        %v647 = vpop.f32.mrb[0].mxu0
        %v648 = vadd.f32 0.0, %v647
        %v649 = vpop.f32.mrb[0].mxu0
        %v650 = vpop.f32.mrb[0].mxu0
        %v651 = vadd.f32 0.0, %v650
        %v652 = vpop.f32.mrb[0].mxu0
        %653 = vmatprep.mubr.bf16.mxu0 %v452
        %654 = vmatmul.mubr.bf16.gmra.mrb[0].mxu0 %v451
        %v655 = vpop.f32.mrb[0].mxu0
        %v656 = vadd.f32 0.0, %v655
        %v657 = vpop.f32.mrb[0].mxu0
        %v658 = vpop.f32.mrb[0].mxu0
        %v659 = vadd.f32 0.0, %v658
        %v660 = vpop.f32.mrb[0].mxu0
        %661 = vdwg.mxu0
        %v662 = vadd.f32 %v325, %v600
        %v663 = vadd.f32 %v326, %v603
        %v664 = vadd.f32 %v327, %v608
        %v665 = vadd.f32 %v328, %v611
        %v666 = vadd.f32 %v329, %v616
        %v667 = vadd.f32 %v330, %v619
        %v668 = vadd.f32 %v331, %v624
        %v669 = vadd.f32 %v332, %v627
        %v670 = vadd.f32 %v333, %v632
        %v671 = vadd.f32 %v334, %v635
        %v672 = vadd.f32 %v335, %v640
        %v673 = vadd.f32 %v336, %v643
        %v674 = vadd.f32 %v337, %v648
        %v675 = vadd.f32 %v338, %v651
        %v676 = vadd.f32 %v339, %v656
        %v677 = vadd.f32 %v340, %v659
        %678 = vst [vmem:[#allocation2] sm:$0xff] %v662
        %679 = vst [vmem:[#allocation2 + $0x8] sm:$0xff] %v663
        %680 = vst [vmem:[#allocation2 + $0x10] sm:$0xff] %v664
        %681 = vst [vmem:[#allocation2 + $0x18] sm:$0xff] %v665
        %682 = vst [vmem:[#allocation2 + $0x20] sm:$0xff] %v666
        %683 = vst [vmem:[#allocation2 + $0x28] sm:$0xff] %v667
        %684 = vst [vmem:[#allocation2 + $0x30] sm:$0xff] %v668
        %685 = vst [vmem:[#allocation2 + $0x38] sm:$0xff] %v669
        %686 = vst [vmem:[#allocation2 + $0x40] sm:$0xff] %v670
        %687 = vst [vmem:[#allocation2 + $0x48] sm:$0xff] %v671
        %688 = vst [vmem:[#allocation2 + $0x50] sm:$0xff] %v672
        %689 = vst [vmem:[#allocation2 + $0x58] sm:$0xff] %v673
        %690 = vst [vmem:[#allocation2 + $0x60] sm:$0xff] %v674
        %691 = vst [vmem:[#allocation2 + $0x68] sm:$0xff] %v675
        %692 = vst [vmem:[#allocation2 + $0x70] sm:$0xff] %v676
        %693 = vst [vmem:[#allocation2 + $0x78] sm:$0xff] %v677
        // Predicated region
        $region45: #{tpu_custom_call.1} parent=31 // pred_check
          %p694 = pneg %p305
        $region46: #{tpu_custom_call.1} parent=31 // pred_check_branch
          %696 = sbr.rel (%p694) target = $region48
        $region47: #{tpu_custom_call.1} parent=31 // pred_region
          %v697 = vld [vmem:[#allocation2] sm:$0xff]
          %v698 = vld [vmem:[#allocation2 + $0x8] sm:$0xff]
          %v699 = vld [vmem:[#allocation2 + $0x10] sm:$0xff]
          %v700 = vld [vmem:[#allocation2 + $0x18] sm:$0xff]
          %v701 = vld [vmem:[#allocation2 + $0x20] sm:$0xff]
          %v702 = vld [vmem:[#allocation2 + $0x28] sm:$0xff]
          %v703 = vld [vmem:[#allocation2 + $0x30] sm:$0xff]
          %v704 = vld [vmem:[#allocation2 + $0x38] sm:$0xff]
          %v705 = vld [vmem:[#allocation2 + $0x40] sm:$0xff]
          %v706 = vld [vmem:[#allocation2 + $0x48] sm:$0xff]
          %v707 = vld [vmem:[#allocation2 + $0x50] sm:$0xff]
          %v708 = vld [vmem:[#allocation2 + $0x58] sm:$0xff]
          %v709 = vld [vmem:[#allocation2 + $0x60] sm:$0xff]
          %v710 = vld [vmem:[#allocation2 + $0x68] sm:$0xff]
          %v711 = vld [vmem:[#allocation2 + $0x70] sm:$0xff]
          %v712 = vld [vmem:[#allocation2 + $0x78] sm:$0xff]
          %v713 = vld [vmem:[%s302] sm:$0x1]
          %v715 = vlaneseq
          %v716 = vshrl.u32 %v715, 7
          %v717 = vsub.s32 0, %v716
          %v718 = vrot.slane %v713, %v717
          %v720 = vadd.f32 %v697, %v718
          %v721 = vadd.f32 %v698, %v718
          %v722 = vadd.f32 %v699, %v718
          %v723 = vadd.f32 %v700, %v718
          %v724 = vadd.f32 %v701, %v718
          %v725 = vadd.f32 %v702, %v718
          %v726 = vadd.f32 %v703, %v718
          %v727 = vadd.f32 %v704, %v718
          %v728 = vadd.f32 %v705, %v718
          %v729 = vadd.f32 %v706, %v718
          %v730 = vadd.f32 %v707, %v718
          %v731 = vadd.f32 %v708, %v718
          %v732 = vadd.f32 %v709, %v718
          %v733 = vadd.f32 %v710, %v718
          %v734 = vadd.f32 %v711, %v718
          %v735 = vadd.f32 %v712, %v718
          %v736 = vmax.f32 %v720, 0.0
          %v737 = vmax.f32 %v721, 0.0
          %v738 = vmax.f32 %v722, 0.0
          %v739 = vmax.f32 %v723, 0.0
          %v740 = vmax.f32 %v724, 0.0
          %v741 = vmax.f32 %v725, 0.0
          %v742 = vmax.f32 %v726, 0.0
          %v743 = vmax.f32 %v727, 0.0
          %v744 = vmax.f32 %v728, 0.0
          %v745 = vmax.f32 %v729, 0.0
          %v746 = vmax.f32 %v730, 0.0
          %v747 = vmax.f32 %v731, 0.0
          %v748 = vmax.f32 %v732, 0.0
          %v749 = vmax.f32 %v733, 0.0
          %v750 = vmax.f32 %v734, 0.0
          %v751 = vmax.f32 %v735, 0.0
          %v752 = vpack.c.bf16 %v737, %v736
          %v753 = vpack.c.bf16 %v739, %v738
          %v754 = vpack.c.bf16 %v741, %v740
          %v755 = vpack.c.bf16 %v743, %v742
          %v756 = vpack.c.bf16 %v745, %v744
          %v757 = vpack.c.bf16 %v747, %v746
          %v758 = vpack.c.bf16 %v749, %v748
          %v759 = vpack.c.bf16 %v751, %v750
          %v768 = vunpack.c.l.b16 %v752
          %v769 = vunpack.c.h.b16 %v752
          %v770 = vunpack.c.l.b16 %v753
          %v771 = vunpack.c.h.b16 %v753
          %v772 = vunpack.c.l.b16 %v754
          %v773 = vunpack.c.h.b16 %v754
          %v774 = vunpack.c.l.b16 %v755
          %v775 = vunpack.c.h.b16 %v755
          %v776 = vunpack.c.l.b16 %v756
          %v777 = vunpack.c.h.b16 %v756
          %v778 = vunpack.c.l.b16 %v757
          %v779 = vunpack.c.h.b16 %v757
          %v780 = vunpack.c.l.b16 %v758
          %v781 = vunpack.c.h.b16 %v758
          %v782 = vunpack.c.l.b16 %v759
          %v783 = vunpack.c.h.b16 %v759
          %v784 = vpack.c.b16 %v768, %v768
          %v785 = vpack.c.b16 %v769, %v769
          %v786 = vpack.c.b16 %v770, %v770
          %v787 = vpack.c.b16 %v771, %v771
          %v788 = vpack.c.b16 %v772, %v772
          %v789 = vpack.c.b16 %v773, %v773
          %v790 = vpack.c.b16 %v774, %v774
          %v791 = vpack.c.b16 %v775, %v775
          %v792 = vpack.c.b16 %v776, %v776
          %v793 = vpack.c.b16 %v777, %v777
          %v794 = vpack.c.b16 %v778, %v778
          %v795 = vpack.c.b16 %v779, %v779
          %v796 = vpack.c.b16 %v780, %v780
          %v797 = vpack.c.b16 %v781, %v781
          %v798 = vpack.c.b16 %v782, %v782
          %v799 = vpack.c.b16 %v783, %v783
          %816 = vst [vmem:[%s293] sm:$0xf] %v784
          %817 = vst [vmem:[%s293 + $0x4] sm:$0xf] %v785
          %818 = vst [vmem:[%s293 + $0x8] sm:$0xf] %v786
          %819 = vst [vmem:[%s293 + $0xc] sm:$0xf] %v787
          %820 = vst [vmem:[%s293 + $0x10] sm:$0xf] %v788
          %821 = vst [vmem:[%s293 + $0x14] sm:$0xf] %v789
          %822 = vst [vmem:[%s293 + $0x18] sm:$0xf] %v790
          %823 = vst [vmem:[%s293 + $0x1c] sm:$0xf] %v791
          %824 = vst [vmem:[%s293 + $0x20] sm:$0xf] %v792
          %825 = vst [vmem:[%s293 + $0x24] sm:$0xf] %v793
          %826 = vst [vmem:[%s293 + $0x28] sm:$0xf] %v794
          %827 = vst [vmem:[%s293 + $0x2c] sm:$0xf] %v795
          %828 = vst [vmem:[%s293 + $0x30] sm:$0xf] %v796
          %829 = vst [vmem:[%s293 + $0x34] sm:$0xf] %v797
          %830 = vst [vmem:[%s293 + $0x38] sm:$0xf] %v798
          %831 = vst [vmem:[%s293 + $0x3c] sm:$0xf] %v799
        $region48: #{tpu_custom_call.1} parent=31 // pred_fallthru
          _
        %s832 = sand.u32 %s149, 1
        %s833 = scalar_lea.sflag [#allocation5], %s832
        %s834 = sand.u32 %s149, 1
        %s835 = smul.addr %s834, 64
        %s836 = scalar_lea.vmem [#allocation8], %s835
        // Predicated region
        $region49: #{tpu_custom_call.1} parent=31 // pred_check
          %p837 = pneg %p159
        $region50: #{tpu_custom_call.1} parent=31 // pred_check_branch
          %839 = sbr.rel (%p837) target = $region52
        $region51: #{tpu_custom_call.1} parent=31 // pred_region
          %s840 = smul.u32 16, %s30
          %s842 = ssub.s32 1024, 1024
          %843 = vsyncadd %s833, %s842
          %s844 = sadd.s32 %s31, %s840
          %s845 = smul.addr %s29, 16
          %s846 = sadd.s32 %s844, %s845
          %s847 = smul.addr %s846, 64
          %s848 = scalar_lea.hbm %s3, %s847
          %s849 = sshll.u32 %s836, 4
          %s850 = int_to_ptr.vmem [resolvable:$true] %s849
          %855 = dma.vmem_to_hbm [thread:$0]  %s850, 1024, %s848, %s833, 64, 64, 4
        $region52: #{tpu_custom_call.1} parent=31 // pred_fallthru
          _
      $region32: #{tpu_custom_call.1} parent=5 // pred_fallthru
        _
      %p856 = scmp.le.s32.totalorder 2, %s18
      // Predicated region
      $region53: #{tpu_custom_call.1} parent=5 // pred_check
        %p857 = pneg %p856
      $region54: #{tpu_custom_call.1} parent=5 // pred_check_branch
        %859 = sbr.rel (%p857) target = $region56
      $region55: #{tpu_custom_call.1} parent=5 // pred_region
        %s860 = ssub.s32 %s18, 2
        // Predicated region
        $region57: #{tpu_custom_call.1} parent=55 // pred_check
          %p861 = pneg %p165
        $region58: #{tpu_custom_call.1} parent=55 // pred_check_branch
          %863 = sbr.rel (%p861) target = $region60
        $region59: #{tpu_custom_call.1} parent=55 // pred_region
          %s864 = sand.u32 %s150, 1
          %s865 = scalar_lea.sflag [#allocation5], %s864
          %s866 = sand.u32 %s150, 1
          %s867 = smul.addr %s866, 64
          %s868 = scalar_lea.vmem [#allocation8], %s867
          %869 = dma.done %s865, 1024
        $region60: #{tpu_custom_call.1} parent=55 // pred_fallthru
          _
      $region56: #{tpu_custom_call.1} parent=5 // pred_fallthru
        _
    $region6: #{tpu_custom_call.1} parent=1 // loop_footer
      %s22 = sadd.s32 1, %s18
    $region7: #{tpu_custom_call.1} parent=1 // loop_footer_branch
      %17 = sbr.rel target = $region3
    $region8: #{tpu_custom_call.1} parent=1 // loop_exit
      _
    %870 = vsyncpa [#allocation4], 1
    %s871 = scalar_lea.sflag [#allocation4], 1
    %872 = vsyncpa %s871, 1
    %873 = vsyncpa [#allocation7], 1
    %s874 = scalar_lea.sflag [#allocation7], 1
    %875 = vsyncpa %s874, 1
    %876 = vsyncpa [#allocation5], 1
    %s877 = scalar_lea.sflag [#allocation5], 1
    %878 = vsyncpa %s877, 1

</llo_original>
